<compile_context>
chip_gen: v5e
topology: v5e:2x2
jax: 0.10.0
libtpu: 0.0.40
codegen_flags: <defaults>
</compile_context>

<pallas_src>
import jax
import jax.numpy as jnp
from jax.experimental import pallas as pl
from jax.experimental.pallas import tpu as pltpu


def pose_gaussian_loss_kernel(packed_ref, out_ref):
    """packed_ref: (D+2, B, D) f32 VMEM; out_ref: (1, 1) f32 VMEM."""
    dp2, B, D = packed_ref.shape
    assert dp2 == D + 2

    e = packed_ref[D] - packed_ref[D + 1]                      # (B, D)
    srow = [packed_ref[i] for i in range(D)]                   # D aligned (B, D) loads

    # Batched, fully unrolled LDL^T (sqrt-free Cholesky); batch on sublanes.
    # sigma[b] = L[b] diag(d[b]) L[b]^T, L unit-lower.  W[i][j] = L[i][j]*d[j].
    # Only the lower triangle of sigma is read (sigma is symmetric).
    # TODO(synk): assumes sigma is symmetric positive-definite (Gaussian
    #             covariance); torch.inverse / torch.linalg.det also accept
    #             general invertible sigma.
    L = [[None] * D for _ in range(D)]
    W = [[None] * D for _ in range(D)]
    inv_d = [None] * D
    det = None
    for j in range(D):
        for i in range(j, D):
            w = srow[i][:, j:j + 1]                            # (B, 1) column extract
            for k in range(j):
                w = w - L[i][k] * W[j][k]
            W[i][j] = w
        d_j = W[j][j]
        det = d_j if det is None else det * d_j
        inv_d[j] = 1.0 / d_j
        for i in range(j + 1, D):
            L[i][j] = W[i][j] * inv_d[j]

    # Forward solve L z = e (unit diagonal); quad[b] = e[b]^T sigma[b]^{-1} e[b].
    z = [None] * D
    for i in range(D):
        t = e[:, i:i + 1]                                      # (B, 1)
        for k in range(i):
            t = t - L[i][k] * z[k]
        z[i] = t
    quad = z[0] * z[0] * inv_d[0]
    for j in range(1, D):
        quad = quad + z[j] * z[j] * inv_d[j]                   # (B, 1)

    per_b = quad + jnp.log(det + 1.0)                          # (B, 1)
    # mean over batch of (quad + log(det+1)) == exp_term + det_term.
    # NOTE: the scalar result stays as a single (1,1) VMEM store; routing it
    # through SMEM would require a vector->scalar move and only saves one
    # masked vst on an already launch/DMA-overhead-bound kernel.
    out_ref[...] = jnp.sum(per_b, axis=0, keepdims=True) * (1.0 / B)


def pose_gaussian_loss(p_delta, p_sigma, pose_gt):
    """pred['p_delta'] -> (B, D); pred['p_sigma'] -> (B, D, D); pose_gt -> (B, D)."""
    B, D = p_delta.shape
    f32 = jnp.float32
    if p_delta.dtype != f32:
        p_delta = p_delta.astype(f32)
    if pose_gt.dtype != f32:
        pose_gt = pose_gt.astype(f32)
    if p_sigma.dtype != f32:
        p_sigma = p_sigma.astype(f32)

    # Layout plumbing (wrapper-side): sigma as (D, B, D) so row i is an aligned
    # (B, D) slab; delta / gt appended as two more leading slabs -> one operand,
    # one DMA for the whole sub-KB problem instead of three.
    sigma_rows = jnp.transpose(p_sigma, (1, 0, 2))             # (D, B, D)
    packed = jnp.concatenate(
        [sigma_rows, p_delta[None], pose_gt[None]], axis=0)    # (D+2, B, D)

    # TODO(synk): if B grows large (>=128), add a grid over the batch axis with
    #             a (TB, .) block + pl.when accumulator (per-core partials on
    #             v7x) and put batch on lanes; at B=8 the call is pure
    #             launch/DMA overhead and a single untiled VMEM block is right.
    out = pl.pallas_call(
        pose_gaussian_loss_kernel,
        out_shape=jax.ShapeDtypeStruct((1, 1), f32),
        in_specs=[pl.BlockSpec(memory_space=pltpu.MemorySpace.VMEM)],
        out_specs=pl.BlockSpec(memory_space=pltpu.MemorySpace.VMEM),
    )(packed)
    return out[0, 0]


if __name__ == "__main__":
    key = jax.random.PRNGKey(0)
    B, D = 8, 6  # 6-DOF pose deltas
    k1, k2, k3 = jax.random.split(key, 3)

    p_delta = jax.random.normal(k1, (B, D), jnp.float32)
    pose_gt = jax.random.normal(k2, (B, D), jnp.float32)
    # Deterministic, well-conditioned SPD covariance: A A^T + I
    A = 0.3 * jax.random.normal(k3, (B, D, D), jnp.float32)
    p_sigma = jnp.einsum("bij,bkj->bik", A, A) + jnp.eye(D, dtype=jnp.float32)[None]

    loss = pose_gaussian_loss(p_delta, p_sigma, pose_gt)
    loss = jax.block_until_ready(loss)

    # Pure-JAX reference (mirrors the PyTorch forward).
    e = p_delta - pose_gt
    sol = jnp.linalg.solve(p_sigma, e[..., None])[..., 0]
    exp_term = jnp.mean(jnp.sum(e * sol, axis=-1))
    det_term = jnp.mean(jnp.log(jnp.linalg.det(p_sigma) + 1.0))
    ref = exp_term + det_term

    assert jnp.allclose(loss, ref, rtol=1e-4, atol=1e-4), (float(loss), float(ref))
    print("KERNEL_OK")
</pallas_src>

<mosaic_0001>
module attributes {stable_mosaic.version = 11 : i64} {
  func.func @pose_gaussian_loss_kernel(%arg0: memref<8x8x6xf32, #tpu.memory_space<vmem>>, %arg1: memref<1x1xf32, #tpu.memory_space<vmem>>) attributes {dimension_semantics = [], scalar_prefetch = 0 : i64, scratch_operands = 0 : i64, tpu.core_type = #tpu.core_type<tc>} {
    %c6 = arith.constant 6 : index
    %c0 = arith.constant 0 : index
    %c0_0 = arith.constant 0 : index
    %0 = vector.load %arg0[%c6, %c0, %c0_0] : memref<8x8x6xf32, #tpu.memory_space<vmem>>, vector<1x8x6xf32>
    %1 = vector.shape_cast %0 : vector<1x8x6xf32> to vector<8x6xf32>
    %c7 = arith.constant 7 : index
    %c0_1 = arith.constant 0 : index
    %c0_2 = arith.constant 0 : index
    %2 = vector.load %arg0[%c7, %c0_1, %c0_2] : memref<8x8x6xf32, #tpu.memory_space<vmem>>, vector<1x8x6xf32>
    %3 = vector.shape_cast %2 : vector<1x8x6xf32> to vector<8x6xf32>
    %4 = arith.subf %1, %3 : vector<8x6xf32>
    %c0_3 = arith.constant 0 : index
    %c0_4 = arith.constant 0 : index
    %c0_5 = arith.constant 0 : index
    %5 = vector.load %arg0[%c0_3, %c0_4, %c0_5] : memref<8x8x6xf32, #tpu.memory_space<vmem>>, vector<1x8x6xf32>
    %6 = vector.shape_cast %5 : vector<1x8x6xf32> to vector<8x6xf32>
    %c1 = arith.constant 1 : index
    %c0_6 = arith.constant 0 : index
    %c0_7 = arith.constant 0 : index
    %7 = vector.load %arg0[%c1, %c0_6, %c0_7] : memref<8x8x6xf32, #tpu.memory_space<vmem>>, vector<1x8x6xf32>
    %8 = vector.shape_cast %7 : vector<1x8x6xf32> to vector<8x6xf32>
    %c2 = arith.constant 2 : index
    %c0_8 = arith.constant 0 : index
    %c0_9 = arith.constant 0 : index
    %9 = vector.load %arg0[%c2, %c0_8, %c0_9] : memref<8x8x6xf32, #tpu.memory_space<vmem>>, vector<1x8x6xf32>
    %10 = vector.shape_cast %9 : vector<1x8x6xf32> to vector<8x6xf32>
    %c3 = arith.constant 3 : index
    %c0_10 = arith.constant 0 : index
    %c0_11 = arith.constant 0 : index
    %11 = vector.load %arg0[%c3, %c0_10, %c0_11] : memref<8x8x6xf32, #tpu.memory_space<vmem>>, vector<1x8x6xf32>
    %12 = vector.shape_cast %11 : vector<1x8x6xf32> to vector<8x6xf32>
    %c4 = arith.constant 4 : index
    %c0_12 = arith.constant 0 : index
    %c0_13 = arith.constant 0 : index
    %13 = vector.load %arg0[%c4, %c0_12, %c0_13] : memref<8x8x6xf32, #tpu.memory_space<vmem>>, vector<1x8x6xf32>
    %14 = vector.shape_cast %13 : vector<1x8x6xf32> to vector<8x6xf32>
    %c5 = arith.constant 5 : index
    %c0_14 = arith.constant 0 : index
    %c0_15 = arith.constant 0 : index
    %15 = vector.load %arg0[%c5, %c0_14, %c0_15] : memref<8x8x6xf32, #tpu.memory_space<vmem>>, vector<1x8x6xf32>
    %16 = vector.shape_cast %15 : vector<1x8x6xf32> to vector<8x6xf32>
    %17 = vector.extract_strided_slice %6 {offsets = [0, 0], sizes = [8, 1], strides = [1, 1]} : vector<8x6xf32> to vector<8x1xf32>
    %18 = vector.extract_strided_slice %8 {offsets = [0, 0], sizes = [8, 1], strides = [1, 1]} : vector<8x6xf32> to vector<8x1xf32>
    %19 = vector.extract_strided_slice %10 {offsets = [0, 0], sizes = [8, 1], strides = [1, 1]} : vector<8x6xf32> to vector<8x1xf32>
    %20 = vector.extract_strided_slice %12 {offsets = [0, 0], sizes = [8, 1], strides = [1, 1]} : vector<8x6xf32> to vector<8x1xf32>
    %21 = vector.extract_strided_slice %14 {offsets = [0, 0], sizes = [8, 1], strides = [1, 1]} : vector<8x6xf32> to vector<8x1xf32>
    %22 = vector.extract_strided_slice %16 {offsets = [0, 0], sizes = [8, 1], strides = [1, 1]} : vector<8x6xf32> to vector<8x1xf32>
    %cst = arith.constant 1.000000e+00 : f32
    %23 = vector.broadcast %cst : f32 to vector<8x1xf32>
    %24 = arith.divf %23, %17 : vector<8x1xf32>
    %25 = arith.mulf %18, %24 : vector<8x1xf32>
    %26 = arith.mulf %19, %24 : vector<8x1xf32>
    %27 = arith.mulf %20, %24 : vector<8x1xf32>
    %28 = arith.mulf %21, %24 : vector<8x1xf32>
    %29 = arith.mulf %22, %24 : vector<8x1xf32>
    %30 = vector.extract_strided_slice %8 {offsets = [0, 1], sizes = [8, 1], strides = [1, 1]} : vector<8x6xf32> to vector<8x1xf32>
    %31 = arith.mulf %25, %18 : vector<8x1xf32>
    %32 = arith.subf %30, %31 : vector<8x1xf32>
    %33 = vector.extract_strided_slice %10 {offsets = [0, 1], sizes = [8, 1], strides = [1, 1]} : vector<8x6xf32> to vector<8x1xf32>
    %34 = arith.mulf %26, %18 : vector<8x1xf32>
    %35 = arith.subf %33, %34 : vector<8x1xf32>
    %36 = vector.extract_strided_slice %12 {offsets = [0, 1], sizes = [8, 1], strides = [1, 1]} : vector<8x6xf32> to vector<8x1xf32>
    %37 = arith.mulf %27, %18 : vector<8x1xf32>
    %38 = arith.subf %36, %37 : vector<8x1xf32>
    %39 = vector.extract_strided_slice %14 {offsets = [0, 1], sizes = [8, 1], strides = [1, 1]} : vector<8x6xf32> to vector<8x1xf32>
    %40 = arith.mulf %28, %18 : vector<8x1xf32>
    %41 = arith.subf %39, %40 : vector<8x1xf32>
    %42 = vector.extract_strided_slice %16 {offsets = [0, 1], sizes = [8, 1], strides = [1, 1]} : vector<8x6xf32> to vector<8x1xf32>
    %43 = arith.mulf %29, %18 : vector<8x1xf32>
    %44 = arith.subf %42, %43 : vector<8x1xf32>
    %45 = arith.mulf %17, %32 : vector<8x1xf32>
    %cst_16 = arith.constant 1.000000e+00 : f32
    %46 = vector.broadcast %cst_16 : f32 to vector<8x1xf32>
    %47 = arith.divf %46, %32 : vector<8x1xf32>
    %48 = arith.mulf %35, %47 : vector<8x1xf32>
    %49 = arith.mulf %38, %47 : vector<8x1xf32>
    %50 = arith.mulf %41, %47 : vector<8x1xf32>
    %51 = arith.mulf %44, %47 : vector<8x1xf32>
    %52 = vector.extract_strided_slice %10 {offsets = [0, 2], sizes = [8, 1], strides = [1, 1]} : vector<8x6xf32> to vector<8x1xf32>
    %53 = arith.mulf %26, %19 : vector<8x1xf32>
    %54 = arith.subf %52, %53 : vector<8x1xf32>
    %55 = arith.mulf %48, %35 : vector<8x1xf32>
    %56 = arith.subf %54, %55 : vector<8x1xf32>
    %57 = vector.extract_strided_slice %12 {offsets = [0, 2], sizes = [8, 1], strides = [1, 1]} : vector<8x6xf32> to vector<8x1xf32>
    %58 = arith.mulf %27, %19 : vector<8x1xf32>
    %59 = arith.subf %57, %58 : vector<8x1xf32>
    %60 = arith.mulf %49, %35 : vector<8x1xf32>
    %61 = arith.subf %59, %60 : vector<8x1xf32>
    %62 = vector.extract_strided_slice %14 {offsets = [0, 2], sizes = [8, 1], strides = [1, 1]} : vector<8x6xf32> to vector<8x1xf32>
    %63 = arith.mulf %28, %19 : vector<8x1xf32>
    %64 = arith.subf %62, %63 : vector<8x1xf32>
    %65 = arith.mulf %50, %35 : vector<8x1xf32>
    %66 = arith.subf %64, %65 : vector<8x1xf32>
    %67 = vector.extract_strided_slice %16 {offsets = [0, 2], sizes = [8, 1], strides = [1, 1]} : vector<8x6xf32> to vector<8x1xf32>
    %68 = arith.mulf %29, %19 : vector<8x1xf32>
    %69 = arith.subf %67, %68 : vector<8x1xf32>
    %70 = arith.mulf %51, %35 : vector<8x1xf32>
    %71 = arith.subf %69, %70 : vector<8x1xf32>
    %72 = arith.mulf %45, %56 : vector<8x1xf32>
    %cst_17 = arith.constant 1.000000e+00 : f32
    %73 = vector.broadcast %cst_17 : f32 to vector<8x1xf32>
    %74 = arith.divf %73, %56 : vector<8x1xf32>
    %75 = arith.mulf %61, %74 : vector<8x1xf32>
    %76 = arith.mulf %66, %74 : vector<8x1xf32>
    %77 = arith.mulf %71, %74 : vector<8x1xf32>
    %78 = vector.extract_strided_slice %12 {offsets = [0, 3], sizes = [8, 1], strides = [1, 1]} : vector<8x6xf32> to vector<8x1xf32>
    %79 = arith.mulf %27, %20 : vector<8x1xf32>
    %80 = arith.subf %78, %79 : vector<8x1xf32>
    %81 = arith.mulf %49, %38 : vector<8x1xf32>
    %82 = arith.subf %80, %81 : vector<8x1xf32>
    %83 = arith.mulf %75, %61 : vector<8x1xf32>
    %84 = arith.subf %82, %83 : vector<8x1xf32>
    %85 = vector.extract_strided_slice %14 {offsets = [0, 3], sizes = [8, 1], strides = [1, 1]} : vector<8x6xf32> to vector<8x1xf32>
    %86 = arith.mulf %28, %20 : vector<8x1xf32>
    %87 = arith.subf %85, %86 : vector<8x1xf32>
    %88 = arith.mulf %50, %38 : vector<8x1xf32>
    %89 = arith.subf %87, %88 : vector<8x1xf32>
    %90 = arith.mulf %76, %61 : vector<8x1xf32>
    %91 = arith.subf %89, %90 : vector<8x1xf32>
    %92 = vector.extract_strided_slice %16 {offsets = [0, 3], sizes = [8, 1], strides = [1, 1]} : vector<8x6xf32> to vector<8x1xf32>
    %93 = arith.mulf %29, %20 : vector<8x1xf32>
    %94 = arith.subf %92, %93 : vector<8x1xf32>
    %95 = arith.mulf %51, %38 : vector<8x1xf32>
    %96 = arith.subf %94, %95 : vector<8x1xf32>
    %97 = arith.mulf %77, %61 : vector<8x1xf32>
    %98 = arith.subf %96, %97 : vector<8x1xf32>
    %99 = arith.mulf %72, %84 : vector<8x1xf32>
    %cst_18 = arith.constant 1.000000e+00 : f32
    %100 = vector.broadcast %cst_18 : f32 to vector<8x1xf32>
    %101 = arith.divf %100, %84 : vector<8x1xf32>
    %102 = arith.mulf %91, %101 : vector<8x1xf32>
    %103 = arith.mulf %98, %101 : vector<8x1xf32>
    %104 = vector.extract_strided_slice %14 {offsets = [0, 4], sizes = [8, 1], strides = [1, 1]} : vector<8x6xf32> to vector<8x1xf32>
    %105 = arith.mulf %28, %21 : vector<8x1xf32>
    %106 = arith.subf %104, %105 : vector<8x1xf32>
    %107 = arith.mulf %50, %41 : vector<8x1xf32>
    %108 = arith.subf %106, %107 : vector<8x1xf32>
    %109 = arith.mulf %76, %66 : vector<8x1xf32>
    %110 = arith.subf %108, %109 : vector<8x1xf32>
    %111 = arith.mulf %102, %91 : vector<8x1xf32>
    %112 = arith.subf %110, %111 : vector<8x1xf32>
    %113 = vector.extract_strided_slice %16 {offsets = [0, 4], sizes = [8, 1], strides = [1, 1]} : vector<8x6xf32> to vector<8x1xf32>
    %114 = arith.mulf %29, %21 : vector<8x1xf32>
    %115 = arith.subf %113, %114 : vector<8x1xf32>
    %116 = arith.mulf %51, %41 : vector<8x1xf32>
    %117 = arith.subf %115, %116 : vector<8x1xf32>
    %118 = arith.mulf %77, %66 : vector<8x1xf32>
    %119 = arith.subf %117, %118 : vector<8x1xf32>
    %120 = arith.mulf %103, %91 : vector<8x1xf32>
    %121 = arith.subf %119, %120 : vector<8x1xf32>
    %122 = arith.mulf %99, %112 : vector<8x1xf32>
    %cst_19 = arith.constant 1.000000e+00 : f32
    %123 = vector.broadcast %cst_19 : f32 to vector<8x1xf32>
    %124 = arith.divf %123, %112 : vector<8x1xf32>
    %125 = arith.mulf %121, %124 : vector<8x1xf32>
    %126 = vector.extract_strided_slice %16 {offsets = [0, 5], sizes = [8, 1], strides = [1, 1]} : vector<8x6xf32> to vector<8x1xf32>
    %127 = arith.mulf %29, %22 : vector<8x1xf32>
    %128 = arith.subf %126, %127 : vector<8x1xf32>
    %129 = arith.mulf %51, %44 : vector<8x1xf32>
    %130 = arith.subf %128, %129 : vector<8x1xf32>
    %131 = arith.mulf %77, %71 : vector<8x1xf32>
    %132 = arith.subf %130, %131 : vector<8x1xf32>
    %133 = arith.mulf %103, %98 : vector<8x1xf32>
    %134 = arith.subf %132, %133 : vector<8x1xf32>
    %135 = arith.mulf %125, %121 : vector<8x1xf32>
    %136 = arith.subf %134, %135 : vector<8x1xf32>
    %137 = arith.mulf %122, %136 : vector<8x1xf32>
    %cst_20 = arith.constant 1.000000e+00 : f32
    %138 = vector.broadcast %cst_20 : f32 to vector<8x1xf32>
    %139 = arith.divf %138, %136 : vector<8x1xf32>
    %140 = vector.extract_strided_slice %4 {offsets = [0, 0], sizes = [8, 1], strides = [1, 1]} : vector<8x6xf32> to vector<8x1xf32>
    %141 = vector.extract_strided_slice %4 {offsets = [0, 1], sizes = [8, 1], strides = [1, 1]} : vector<8x6xf32> to vector<8x1xf32>
    %142 = arith.mulf %25, %140 : vector<8x1xf32>
    %143 = arith.subf %141, %142 : vector<8x1xf32>
    %144 = vector.extract_strided_slice %4 {offsets = [0, 2], sizes = [8, 1], strides = [1, 1]} : vector<8x6xf32> to vector<8x1xf32>
    %145 = arith.mulf %26, %140 : vector<8x1xf32>
    %146 = arith.subf %144, %145 : vector<8x1xf32>
    %147 = arith.mulf %48, %143 : vector<8x1xf32>
    %148 = arith.subf %146, %147 : vector<8x1xf32>
    %149 = vector.extract_strided_slice %4 {offsets = [0, 3], sizes = [8, 1], strides = [1, 1]} : vector<8x6xf32> to vector<8x1xf32>
    %150 = arith.mulf %27, %140 : vector<8x1xf32>
    %151 = arith.subf %149, %150 : vector<8x1xf32>
    %152 = arith.mulf %49, %143 : vector<8x1xf32>
    %153 = arith.subf %151, %152 : vector<8x1xf32>
    %154 = arith.mulf %75, %148 : vector<8x1xf32>
    %155 = arith.subf %153, %154 : vector<8x1xf32>
    %156 = vector.extract_strided_slice %4 {offsets = [0, 4], sizes = [8, 1], strides = [1, 1]} : vector<8x6xf32> to vector<8x1xf32>
    %157 = arith.mulf %28, %140 : vector<8x1xf32>
    %158 = arith.subf %156, %157 : vector<8x1xf32>
    %159 = arith.mulf %50, %143 : vector<8x1xf32>
    %160 = arith.subf %158, %159 : vector<8x1xf32>
    %161 = arith.mulf %76, %148 : vector<8x1xf32>
    %162 = arith.subf %160, %161 : vector<8x1xf32>
    %163 = arith.mulf %102, %155 : vector<8x1xf32>
    %164 = arith.subf %162, %163 : vector<8x1xf32>
    %165 = vector.extract_strided_slice %4 {offsets = [0, 5], sizes = [8, 1], strides = [1, 1]} : vector<8x6xf32> to vector<8x1xf32>
    %166 = arith.mulf %29, %140 : vector<8x1xf32>
    %167 = arith.subf %165, %166 : vector<8x1xf32>
    %168 = arith.mulf %51, %143 : vector<8x1xf32>
    %169 = arith.subf %167, %168 : vector<8x1xf32>
    %170 = arith.mulf %77, %148 : vector<8x1xf32>
    %171 = arith.subf %169, %170 : vector<8x1xf32>
    %172 = arith.mulf %103, %155 : vector<8x1xf32>
    %173 = arith.subf %171, %172 : vector<8x1xf32>
    %174 = arith.mulf %125, %164 : vector<8x1xf32>
    %175 = arith.subf %173, %174 : vector<8x1xf32>
    %176 = arith.mulf %140, %140 : vector<8x1xf32>
    %177 = arith.mulf %176, %24 : vector<8x1xf32>
    %178 = arith.mulf %143, %143 : vector<8x1xf32>
    %179 = arith.mulf %178, %47 : vector<8x1xf32>
    %180 = arith.addf %177, %179 : vector<8x1xf32>
    %181 = arith.mulf %148, %148 : vector<8x1xf32>
    %182 = arith.mulf %181, %74 : vector<8x1xf32>
    %183 = arith.addf %180, %182 : vector<8x1xf32>
    %184 = arith.mulf %155, %155 : vector<8x1xf32>
    %185 = arith.mulf %184, %101 : vector<8x1xf32>
    %186 = arith.addf %183, %185 : vector<8x1xf32>
    %187 = arith.mulf %164, %164 : vector<8x1xf32>
    %188 = arith.mulf %187, %124 : vector<8x1xf32>
    %189 = arith.addf %186, %188 : vector<8x1xf32>
    %190 = arith.mulf %175, %175 : vector<8x1xf32>
    %191 = arith.mulf %190, %139 : vector<8x1xf32>
    %192 = arith.addf %189, %191 : vector<8x1xf32>
    %cst_21 = arith.constant 1.000000e+00 : f32
    %193 = vector.broadcast %cst_21 : f32 to vector<8x1xf32>
    %194 = arith.addf %137, %193 : vector<8x1xf32>
    %195 = math.log %194 : vector<8x1xf32>
    %196 = arith.addf %192, %195 : vector<8x1xf32>
    %cst_22 = arith.constant dense<0.000000e+00> : vector<1xf32>
    %197 = vector.multi_reduction <add>, %196, %cst_22 [0] : vector<8x1xf32> to vector<1xf32>
    %198 = vector.shape_cast %197 : vector<1xf32> to vector<1x1xf32>
    %cst_23 = arith.constant 1.250000e-01 : f32
    %199 = vector.broadcast %cst_23 : f32 to vector<1x1xf32>
    %200 = arith.mulf %198, %199 : vector<1x1xf32>
    %c0_24 = arith.constant 0 : index
    %c0_25 = arith.constant 0 : index
    %201 = vector.load %arg1[%c0_24, %c0_25] : memref<1x1xf32, #tpu.memory_space<vmem>>, vector<1x1xf32>
    tpu.vector_store %arg1[%c0_24, %c0_25], %200 {strides = array<i32>} : memref<1x1xf32, #tpu.memory_space<vmem>>, vector<1x1xf32>,
    return
  }
}

</mosaic_0001>

<llo_original>
// kernel: tpu_custom_call.1
$region0: #{tpu_custom_call.1}
  #allocation0 [shape = 'u32[]', space=smem, size = 0x4, offset = 0x4, fixed_abs, tag = 'smem constant byte address 0x4 - core index']
  #allocation1 [shape = 'u32[72,128]{1,0:T(1,128)}', space=vmem, size = 0x9000, scoped, tag = 'internal scratch']
  %s0 = inlined_call_operand.vmem [shape: f32[8,8,6], index: 0, kind: input, shape index: {}]
  %s1 = inlined_call_operand.hbm [shape: f32[1,1], index: 1, kind: output, shape index: {}]
  %s2 = sld [smem:[#allocation0]]
  $region14: #{tpu_custom_call.1} parent=0
    _
  %s4 = ssub.s32 1, %s2
  %s5 = scalar_select 0, %s4, %s2
  $region1: #{tpu_custom_call.1} parent=0
    #allocation2 [shape = 'u8[512]{0}', space=vmem, size = 0x400, scoped, tag = 'output window, operand 0, single buffered']
    #allocation3 [shape = 's32[1]{0}', space=sflag, size = 0x4, scoped, tag = 'scoped memory for tpu_custom_call.1']
    %6 = vsyncpa [#allocation3], 0
    // Predicated region
    $region2: #{tpu_custom_call.1} parent=1 // pred_check
      _
    $region3: #{tpu_custom_call.1} parent=1 // pred_check_branch
      %8 = sbr.rel (0) target = $region5
    $region4: #{tpu_custom_call.1} parent=1 // pred_region
      _
    $region5: #{tpu_custom_call.1} parent=1 // pred_fallthru
      _
    %s9 = scalar_lea.vmem %s0, 48
    %v10 = vld [vmem:[%s9] sm:$0xff]
    %s11 = scalar_lea.vmem %s0, 56
    %v12 = vld [vmem:[%s11] sm:$0xff]
    %v13 = vsub.f32 %v10, %v12
    %v14 = vld [vmem:[%s0] sm:$0xff]
    %s15 = scalar_lea.vmem %s0, 8
    %v16 = vld [vmem:[%s15] sm:$0xff]
    %s17 = scalar_lea.vmem %s0, 16
    %v18 = vld [vmem:[%s17] sm:$0xff]
    %s19 = scalar_lea.vmem %s0, 24
    %v20 = vld [vmem:[%s19] sm:$0xff]
    %s21 = scalar_lea.vmem %s0, 32
    %v22 = vld [vmem:[%s21] sm:$0xff]
    %s23 = scalar_lea.vmem %s0, 40
    %v24 = vld [vmem:[%s23] sm:$0xff]
    %v25 = vrcp.pop %v14
    %v26 = vmul.f32 %v14, %v25
    %v27 = vsub.f32 1.0, %v26
    %v28 = vmul.f32 %v25, %v27
    %v29 = vadd.f32 %v25, %v28
    %vm30 = vweird.f32 %v14
    %vm31 = vweird.f32 %v25
    %vm32 = vmor %vm30, %vm31
    %v33 = vsel %vm32, %v25, %v29
    %v34 = vand.u32 2147483647, %v14
    %vm35 = vcmp.eq.f32.partialorder %v34, 8.507059e+37
    %v36 = vand.u32 %v14, 2147483648
    %v37 = vor.u32 1.1754944e-38, %v36
    %v38 = vsel %vm35, %v37, %v33
    %v39 = vmul.f32 1.0, %v38
    %v40 = vmul.f32 %v16, %v39
    %v41 = vmul.f32 %v18, %v39
    %v42 = vmul.f32 %v20, %v39
    %v43 = vmul.f32 %v22, %v39
    %v44 = vmul.f32 %v24, %v39
    %v45 = vmul.f32 %v40, %v16
    %47 = vrot.lane.b32.xlu0 %v45, 1
    %v48 = vpop.permute.xlu0 %47
    %v50 = vsub.f32 %v16, %v48
    %v51 = vmul.f32 %v41, %v16
    %53 = vrot.lane.b32.xlu0 %v51, 1
    %v54 = vpop.permute.xlu0 %53
    %v56 = vsub.f32 %v18, %v54
    %v57 = vmul.f32 %v42, %v16
    %59 = vrot.lane.b32.xlu0 %v57, 1
    %v60 = vpop.permute.xlu0 %59
    %v62 = vsub.f32 %v20, %v60
    %v63 = vmul.f32 %v43, %v16
    %65 = vrot.lane.b32.xlu0 %v63, 1
    %v66 = vpop.permute.xlu0 %65
    %v68 = vsub.f32 %v22, %v66
    %v69 = vmul.f32 %v44, %v16
    %71 = vrot.lane.b32.xlu0 %v69, 1
    %v72 = vpop.permute.xlu0 %71
    %v74 = vsub.f32 %v24, %v72
    %76 = vrot.lane.b32.xlu0 %v50, 127
    %v77 = vpop.permute.xlu0 %76
    %v79 = vmul.f32 %v14, %v77
    %v80 = vrcp.pop %v50
    %v81 = vmul.f32 %v50, %v80
    %v82 = vsub.f32 1.0, %v81
    %v83 = vmul.f32 %v80, %v82
    %v84 = vadd.f32 %v80, %v83
    %vm85 = vweird.f32 %v50
    %vm86 = vweird.f32 %v80
    %vm87 = vmor %vm85, %vm86
    %v88 = vsel %vm87, %v80, %v84
    %v89 = vand.u32 2147483647, %v50
    %vm90 = vcmp.eq.f32.partialorder %v89, 8.507059e+37
    %v91 = vand.u32 %v50, 2147483648
    %v92 = vor.u32 1.1754944e-38, %v91
    %v93 = vsel %vm90, %v92, %v88
    %v94 = vmul.f32 1.0, %v93
    %v95 = vmul.f32 %v56, %v94
    %v96 = vmul.f32 %v62, %v94
    %v97 = vmul.f32 %v68, %v94
    %v98 = vmul.f32 %v74, %v94
    %v99 = vmul.f32 %v41, %v18
    %101 = vrot.lane.b32.xlu0 %v99, 2
    %v102 = vpop.permute.xlu0 %101
    %v104 = vsub.f32 %v18, %v102
    %v105 = vmul.f32 %v95, %v56
    %107 = vrot.lane.b32.xlu0 %v105, 1
    %v108 = vpop.permute.xlu0 %107
    %v110 = vsub.f32 %v104, %v108
    %v111 = vmul.f32 %v42, %v18
    %113 = vrot.lane.b32.xlu0 %v111, 2
    %v114 = vpop.permute.xlu0 %113
    %v116 = vsub.f32 %v20, %v114
    %v117 = vmul.f32 %v96, %v56
    %119 = vrot.lane.b32.xlu0 %v117, 1
    %v120 = vpop.permute.xlu0 %119
    %v122 = vsub.f32 %v116, %v120
    %v123 = vmul.f32 %v43, %v18
    %125 = vrot.lane.b32.xlu0 %v123, 2
    %v126 = vpop.permute.xlu0 %125
    %v128 = vsub.f32 %v22, %v126
    %v129 = vmul.f32 %v97, %v56
    %131 = vrot.lane.b32.xlu0 %v129, 1
    %v132 = vpop.permute.xlu0 %131
    %v134 = vsub.f32 %v128, %v132
    %v135 = vmul.f32 %v44, %v18
    %137 = vrot.lane.b32.xlu0 %v135, 2
    %v138 = vpop.permute.xlu0 %137
    %v140 = vsub.f32 %v24, %v138
    %v141 = vmul.f32 %v98, %v56
    %143 = vrot.lane.b32.xlu0 %v141, 1
    %v144 = vpop.permute.xlu0 %143
    %v146 = vsub.f32 %v140, %v144
    %148 = vrot.lane.b32.xlu0 %v110, 126
    %v149 = vpop.permute.xlu0 %148
    %v151 = vmul.f32 %v79, %v149
    %v152 = vrcp.pop %v110
    %v153 = vmul.f32 %v110, %v152
    %v154 = vsub.f32 1.0, %v153
    %v155 = vmul.f32 %v152, %v154
    %v156 = vadd.f32 %v152, %v155
    %vm157 = vweird.f32 %v110
    %vm158 = vweird.f32 %v152
    %vm159 = vmor %vm157, %vm158
    %v160 = vsel %vm159, %v152, %v156
    %v161 = vand.u32 2147483647, %v110
    %vm162 = vcmp.eq.f32.partialorder %v161, 8.507059e+37
    %v163 = vand.u32 %v110, 2147483648
    %v164 = vor.u32 1.1754944e-38, %v163
    %v165 = vsel %vm162, %v164, %v160
    %v166 = vmul.f32 1.0, %v165
    %v167 = vmul.f32 %v122, %v166
    %v168 = vmul.f32 %v134, %v166
    %v169 = vmul.f32 %v146, %v166
    %v170 = vmul.f32 %v42, %v20
    %172 = vrot.lane.b32.xlu0 %v170, 3
    %v173 = vpop.permute.xlu0 %172
    %v175 = vsub.f32 %v20, %v173
    %v176 = vmul.f32 %v96, %v62
    %178 = vrot.lane.b32.xlu0 %v176, 2
    %v179 = vpop.permute.xlu0 %178
    %v181 = vsub.f32 %v175, %v179
    %v182 = vmul.f32 %v167, %v122
    %184 = vrot.lane.b32.xlu0 %v182, 1
    %v185 = vpop.permute.xlu0 %184
    %v187 = vsub.f32 %v181, %v185
    %v188 = vmul.f32 %v43, %v20
    %190 = vrot.lane.b32.xlu0 %v188, 3
    %v191 = vpop.permute.xlu0 %190
    %v193 = vsub.f32 %v22, %v191
    %v194 = vmul.f32 %v97, %v62
    %196 = vrot.lane.b32.xlu0 %v194, 2
    %v197 = vpop.permute.xlu0 %196
    %v199 = vsub.f32 %v193, %v197
    %v200 = vmul.f32 %v168, %v122
    %202 = vrot.lane.b32.xlu0 %v200, 1
    %v203 = vpop.permute.xlu0 %202
    %v205 = vsub.f32 %v199, %v203
    %v206 = vmul.f32 %v44, %v20
    %208 = vrot.lane.b32.xlu0 %v206, 3
    %v209 = vpop.permute.xlu0 %208
    %v211 = vsub.f32 %v24, %v209
    %v212 = vmul.f32 %v98, %v62
    %214 = vrot.lane.b32.xlu0 %v212, 2
    %v215 = vpop.permute.xlu0 %214
    %v217 = vsub.f32 %v211, %v215
    %v218 = vmul.f32 %v169, %v122
    %220 = vrot.lane.b32.xlu0 %v218, 1
    %v221 = vpop.permute.xlu0 %220
    %v223 = vsub.f32 %v217, %v221
    %225 = vrot.lane.b32.xlu0 %v187, 125
    %v226 = vpop.permute.xlu0 %225
    %v228 = vmul.f32 %v151, %v226
    %v229 = vrcp.pop %v187
    %v230 = vmul.f32 %v187, %v229
    %v231 = vsub.f32 1.0, %v230
    %v232 = vmul.f32 %v229, %v231
    %v233 = vadd.f32 %v229, %v232
    %vm234 = vweird.f32 %v187
    %vm235 = vweird.f32 %v229
    %vm236 = vmor %vm234, %vm235
    %v237 = vsel %vm236, %v229, %v233
    %v238 = vand.u32 2147483647, %v187
    %vm239 = vcmp.eq.f32.partialorder %v238, 8.507059e+37
    %v240 = vand.u32 %v187, 2147483648
    %v241 = vor.u32 1.1754944e-38, %v240
    %v242 = vsel %vm239, %v241, %v237
    %v243 = vmul.f32 1.0, %v242
    %v244 = vmul.f32 %v205, %v243
    %v245 = vmul.f32 %v223, %v243
    %v246 = vmul.f32 %v43, %v22
    %248 = vrot.lane.b32.xlu0 %v246, 4
    %v249 = vpop.permute.xlu0 %248
    %v251 = vsub.f32 %v22, %v249
    %v252 = vmul.f32 %v97, %v68
    %254 = vrot.lane.b32.xlu0 %v252, 3
    %v255 = vpop.permute.xlu0 %254
    %v257 = vsub.f32 %v251, %v255
    %v258 = vmul.f32 %v168, %v134
    %260 = vrot.lane.b32.xlu0 %v258, 2
    %v261 = vpop.permute.xlu0 %260
    %v263 = vsub.f32 %v257, %v261
    %v264 = vmul.f32 %v244, %v205
    %266 = vrot.lane.b32.xlu0 %v264, 1
    %v267 = vpop.permute.xlu0 %266
    %v269 = vsub.f32 %v263, %v267
    %v270 = vmul.f32 %v44, %v22
    %272 = vrot.lane.b32.xlu0 %v270, 4
    %v273 = vpop.permute.xlu0 %272
    %v275 = vsub.f32 %v24, %v273
    %v276 = vmul.f32 %v98, %v68
    %278 = vrot.lane.b32.xlu0 %v276, 3
    %v279 = vpop.permute.xlu0 %278
    %v281 = vsub.f32 %v275, %v279
    %v282 = vmul.f32 %v169, %v134
    %284 = vrot.lane.b32.xlu0 %v282, 2
    %v285 = vpop.permute.xlu0 %284
    %v287 = vsub.f32 %v281, %v285
    %v288 = vmul.f32 %v245, %v205
    %290 = vrot.lane.b32.xlu0 %v288, 1
    %v291 = vpop.permute.xlu0 %290
    %v293 = vsub.f32 %v287, %v291
    %295 = vrot.lane.b32.xlu0 %v269, 124
    %v296 = vpop.permute.xlu0 %295
    %v298 = vmul.f32 %v228, %v296
    %v299 = vrcp.pop %v269
    %v300 = vmul.f32 %v269, %v299
    %v301 = vsub.f32 1.0, %v300
    %v302 = vmul.f32 %v299, %v301
    %v303 = vadd.f32 %v299, %v302
    %vm304 = vweird.f32 %v269
    %vm305 = vweird.f32 %v299
    %vm306 = vmor %vm304, %vm305
    %v307 = vsel %vm306, %v299, %v303
    %v308 = vand.u32 2147483647, %v269
    %vm309 = vcmp.eq.f32.partialorder %v308, 8.507059e+37
    %v310 = vand.u32 %v269, 2147483648
    %v311 = vor.u32 1.1754944e-38, %v310
    %v312 = vsel %vm309, %v311, %v307
    %v313 = vmul.f32 1.0, %v312
    %v314 = vmul.f32 %v293, %v313
    %v315 = vmul.f32 %v44, %v24
    %317 = vrot.lane.b32.xlu0 %v315, 5
    %v318 = vpop.permute.xlu0 %317
    %v320 = vsub.f32 %v24, %v318
    %v321 = vmul.f32 %v98, %v74
    %323 = vrot.lane.b32.xlu0 %v321, 4
    %v324 = vpop.permute.xlu0 %323
    %v326 = vsub.f32 %v320, %v324
    %v327 = vmul.f32 %v169, %v146
    %329 = vrot.lane.b32.xlu0 %v327, 3
    %v330 = vpop.permute.xlu0 %329
    %v332 = vsub.f32 %v326, %v330
    %v333 = vmul.f32 %v245, %v223
    %335 = vrot.lane.b32.xlu0 %v333, 2
    %v336 = vpop.permute.xlu0 %335
    %v338 = vsub.f32 %v332, %v336
    %v339 = vmul.f32 %v314, %v293
    %341 = vrot.lane.b32.xlu0 %v339, 1
    %v342 = vpop.permute.xlu0 %341
    %v344 = vsub.f32 %v338, %v342
    %346 = vrot.lane.b32.xlu0 %v344, 123
    %v347 = vpop.permute.xlu0 %346
    %v349 = vmul.f32 %v298, %v347
    %v350 = vrcp.pop %v344
    %v351 = vmul.f32 %v344, %v350
    %v352 = vsub.f32 1.0, %v351
    %v353 = vmul.f32 %v350, %v352
    %v354 = vadd.f32 %v350, %v353
    %vm355 = vweird.f32 %v344
    %vm356 = vweird.f32 %v350
    %vm357 = vmor %vm355, %vm356
    %v358 = vsel %vm357, %v350, %v354
    %v359 = vand.u32 2147483647, %v344
    %vm360 = vcmp.eq.f32.partialorder %v359, 8.507059e+37
    %v361 = vand.u32 %v344, 2147483648
    %v362 = vor.u32 1.1754944e-38, %v361
    %v363 = vsel %vm360, %v362, %v358
    %v364 = vmul.f32 1.0, %v363
    %v365 = vmul.f32 %v40, %v13
    %367 = vrot.lane.b32.xlu0 %v365, 1
    %v368 = vpop.permute.xlu0 %367
    %v370 = vsub.f32 %v13, %v368
    %v371 = vmul.f32 %v41, %v13
    %373 = vrot.lane.b32.xlu0 %v371, 2
    %v374 = vpop.permute.xlu0 %373
    %v376 = vsub.f32 %v13, %v374
    %v377 = vmul.f32 %v95, %v370
    %379 = vrot.lane.b32.xlu0 %v377, 1
    %v380 = vpop.permute.xlu0 %379
    %v382 = vsub.f32 %v376, %v380
    %v383 = vmul.f32 %v42, %v13
    %385 = vrot.lane.b32.xlu0 %v383, 3
    %v386 = vpop.permute.xlu0 %385
    %v388 = vsub.f32 %v13, %v386
    %v389 = vmul.f32 %v96, %v370
    %391 = vrot.lane.b32.xlu0 %v389, 2
    %v392 = vpop.permute.xlu0 %391
    %v394 = vsub.f32 %v388, %v392
    %v395 = vmul.f32 %v167, %v382
    %397 = vrot.lane.b32.xlu0 %v395, 1
    %v398 = vpop.permute.xlu0 %397
    %v400 = vsub.f32 %v394, %v398
    %v401 = vmul.f32 %v43, %v13
    %403 = vrot.lane.b32.xlu0 %v401, 4
    %v404 = vpop.permute.xlu0 %403
    %v406 = vsub.f32 %v13, %v404
    %v407 = vmul.f32 %v97, %v370
    %409 = vrot.lane.b32.xlu0 %v407, 3
    %v410 = vpop.permute.xlu0 %409
    %v412 = vsub.f32 %v406, %v410
    %v413 = vmul.f32 %v168, %v382
    %415 = vrot.lane.b32.xlu0 %v413, 2
    %v416 = vpop.permute.xlu0 %415
    %v418 = vsub.f32 %v412, %v416
    %v419 = vmul.f32 %v244, %v400
    %421 = vrot.lane.b32.xlu0 %v419, 1
    %v422 = vpop.permute.xlu0 %421
    %v424 = vsub.f32 %v418, %v422
    %v425 = vmul.f32 %v44, %v13
    %427 = vrot.lane.b32.xlu0 %v425, 5
    %v428 = vpop.permute.xlu0 %427
    %v430 = vsub.f32 %v13, %v428
    %v431 = vmul.f32 %v98, %v370
    %433 = vrot.lane.b32.xlu0 %v431, 4
    %v434 = vpop.permute.xlu0 %433
    %v436 = vsub.f32 %v430, %v434
    %v437 = vmul.f32 %v169, %v382
    %439 = vrot.lane.b32.xlu0 %v437, 3
    %v440 = vpop.permute.xlu0 %439
    %v442 = vsub.f32 %v436, %v440
    %v443 = vmul.f32 %v245, %v400
    %445 = vrot.lane.b32.xlu0 %v443, 2
    %v446 = vpop.permute.xlu0 %445
    %v448 = vsub.f32 %v442, %v446
    %v449 = vmul.f32 %v314, %v424
    %451 = vrot.lane.b32.xlu0 %v449, 1
    %v452 = vpop.permute.xlu0 %451
    %v454 = vsub.f32 %v448, %v452
    %v455 = vmul.f32 %v13, %v13
    %v456 = vmul.f32 %v455, %v39
    %v457 = vmul.f32 %v370, %v370
    %v458 = vmul.f32 %v457, %v94
    %460 = vrot.lane.b32.xlu0 %v458, 127
    %v461 = vpop.permute.xlu0 %460
    %v463 = vadd.f32 %v456, %v461
    %v464 = vmul.f32 %v382, %v382
    %v465 = vmul.f32 %v464, %v166
    %467 = vrot.lane.b32.xlu0 %v465, 126
    %v468 = vpop.permute.xlu0 %467
    %v470 = vadd.f32 %v463, %v468
    %v471 = vmul.f32 %v400, %v400
    %v472 = vmul.f32 %v471, %v243
    %474 = vrot.lane.b32.xlu0 %v472, 125
    %v475 = vpop.permute.xlu0 %474
    %v477 = vadd.f32 %v470, %v475
    %v478 = vmul.f32 %v424, %v424
    %v479 = vmul.f32 %v478, %v313
    %481 = vrot.lane.b32.xlu0 %v479, 124
    %v482 = vpop.permute.xlu0 %481
    %v484 = vadd.f32 %v477, %v482
    %v485 = vmul.f32 %v454, %v454
    %v486 = vmul.f32 %v485, %v364
    %488 = vrot.lane.b32.xlu0 %v486, 123
    %v489 = vpop.permute.xlu0 %488
    %v491 = vadd.f32 %v484, %v489
    %v492 = vadd.f32 %v349, 1.0
    %v493 = vlog2.pop %v492
    %v494 = vmul.f32 %v493, 0.6931472
    %v495 = vadd.f32 %v491, %v494
    %vm496 = vcmask 7168
    %v497 = vsel %vm496, %v495, 0.0
    %v498 = vrot.slane %v497, 4
    %v499 = vadd.f32 %v497, %v498
    %v500 = vrot.slane %v499, 2
    %v501 = vadd.f32 %v499, %v500
    %v502 = vrot.slane %v501, 1
    %v503 = vadd.f32 %v501, %v502
    %v504 = vmul.f32 %v503, 0.125
    %vm505 = vcmask 0
    %506 = vst.msk [vmem:[#allocation2] sm:$0x1] %vm505, %v504
    // Predicated region
    $region6: #{tpu_custom_call.1} parent=1 // pred_check
      _
    $region7: #{tpu_custom_call.1} parent=1 // pred_check_branch
      %508 = sbr.rel (0) target = $region9
    $region8: #{tpu_custom_call.1} parent=1 // pred_region
      %510 = vsyncadd [#allocation3], 0
      %s512 = sshll.u32 [#allocation2], 4
      %s513 = int_to_ptr.vmem [resolvable:$true] %s512
      %s514 = sshll.u32 %s1, 4
      %s515 = int_to_ptr.hbm [resolvable:$true] %s514
      %517 = dma.vmem_to_hbm [thread:$0]  %s513, 16, %s515, [#allocation3]
    $region9: #{tpu_custom_call.1} parent=1 // pred_fallthru
      _
    // Predicated region
    $region10: #{tpu_custom_call.1} parent=1 // pred_check
      _
    $region11: #{tpu_custom_call.1} parent=1 // pred_check_branch
      %519 = sbr.rel (0) target = $region13
    $region12: #{tpu_custom_call.1} parent=1 // pred_region
      %521 = dma.done [#allocation3], 16
    $region13: #{tpu_custom_call.1} parent=1 // pred_fallthru
      _
    %522 = vsyncpa [#allocation3], 1

</llo_original>
